<compile_context>
chip_gen: v7x
topology: tpu7x:2x2x1
jax: 0.10.0
libtpu: 0.0.40
codegen_flags: <defaults>
</compile_context>

<pallas_src>
import jax
import jax.numpy as jnp
from jax.experimental import pallas as pl
from jax.experimental.pallas import tpu as pltpu


def _bmm_t_kernel(x_ref, y_ref, o_ref, acc_ref):
    # x_ref: (bb, tm, tk), y_ref: (bb, tk, tn)
    # o_ref: (bb, tn, tm), acc_ref: (bb, tm, tn) f32 scratch.
    k = pl.program_id(3)

    @pl.when(k == 0)
    def _():
        acc_ref[...] = jnp.zeros_like(acc_ref)

    bb = x_ref.shape[0]
    for b in range(bb):  # small, static head-block -> unrolled at trace time
        # Canonical MXU orientation: contract x's last dim with y's first dim.
        acc_ref[b] += jnp.dot(
            x_ref[b], y_ref[b], preferred_element_type=jnp.float32
        )

    @pl.when(k == pl.num_programs(3) - 1)
    def _():
        for b in range(bb):
            # Single result-side transpose (XLU), once per output tile.
            o_ref[b] = acc_ref[b].T.astype(o_ref.dtype)


def _pick_tile(dim, target=512):
    """Tile for one of M/K/N: the full dim when small, otherwise the largest
    multiple of 128 <= target that divides it (tiled last-two block dims must
    be (8,128)-aligned or equal to the full array dim)."""
    if dim <= target:
        return dim
    t = (target // 128) * 128
    while t >= 128:
        if dim % t == 0:
            return t
        t -= 128
    return dim  # no aligned divisor; fall back to the whole dim


def _pick_head_block(bh, per_head_bytes, max_heads=8, budget=2 << 20):
    """How many (b, h) matmuls to pack per grid step: keep the block under
    `budget` bytes and leave >= 2 grid steps so megacore keeps parallel work."""
    best = 1
    for bb in range(1, min(bh, max_heads) + 1):
        if bh % bb:
            continue
        if bb * per_head_bytes > budget:
            break
        if bh // bb >= 2 or bh == 1:
            best = bb
    return best


def outtransfree_fp32_bmm_v4(x1, y1):
    """x1: (B, H, M, K) f32, y1: (B, H, K, N) f32 -> (B, H, N, M) f32."""
    B, H, M, K = x1.shape
    B2, H2, K2, N = y1.shape
    assert (B, H, K) == (B2, H2, K2), "incompatible batched matmul shapes"

    BH = B * H
    x = x1.reshape(BH, M, K)   # free reshape (metadata only)
    y = y1.reshape(BH, K, N)

    tm = _pick_tile(M)
    tk = _pick_tile(K)
    tn = _pick_tile(N)

    itemsize = 4  # f32
    per_head_bytes = itemsize * (tm * tk + tk * tn + 2 * tn * tm)  # x, y, out, acc
    bb = _pick_head_block(BH, per_head_bytes)

    grid = (BH // bb, N // tn, M // tm, K // tk)

    block_bytes = itemsize * bb * (tm * tk + tk * tn + tn * tm)
    acc_bytes = itemsize * bb * tm * tn
    vmem_limit = min(max(2 * block_bytes + acc_bytes + (8 << 20), 32 << 20), 64 << 20)

    cost = pl.CostEstimate(
        flops=2 * BH * M * N * K,
        transcendentals=0,
        bytes_accessed=itemsize * BH * (M * K + K * N + N * M),
    )

    out = pl.pallas_call(
        _bmm_t_kernel,
        out_shape=jax.ShapeDtypeStruct((BH, N, M), jnp.float32),
        grid_spec=pltpu.PrefetchScalarGridSpec(
            num_scalar_prefetch=0,
            grid=grid,
            in_specs=[
                pl.BlockSpec((bb, tm, tk), lambda bh, n, m, k: (bh, m, k)),
                pl.BlockSpec((bb, tk, tn), lambda bh, n, m, k: (bh, k, n)),
            ],
            out_specs=pl.BlockSpec((bb, tn, tm), lambda bh, n, m, k: (bh, n, m)),
            scratch_shapes=[pltpu.VMEM((bb, tm, tn), jnp.float32)],
        ),
        compiler_params=pltpu.CompilerParams(
            dimension_semantics=("parallel", "parallel", "parallel", "arbitrary"),
            vmem_limit_bytes=vmem_limit,
        ),
        cost_estimate=cost,
    )(x, y)

    # Note: when M < 128 the transposed output tile is not lane-dense; for such
    # problems the kernel could emit (..., M, N) and carry the permute as a
    # wrapper-level layout change, but the fused transpose is kept here to
    # preserve the module's output layout end-to-end.
    return out.reshape(B, H, N, M)


if __name__ == "__main__":
    # Small shapes consistent with the 4-D batched matmul + permute(0,1,3,2).
    B, H, M, K, N = 2, 4, 16, 32, 16

    key = jax.random.PRNGKey(0)
    kx, ky = jax.random.split(key)
    x1 = jax.random.normal(kx, (B, H, M, K), dtype=jnp.float32)
    y1 = jax.random.normal(ky, (B, H, K, N), dtype=jnp.float32)

    out = jax.block_until_ready(outtransfree_fp32_bmm_v4(x1, y1))

    # Reference check against plain JAX (matmul + permute(0,1,3,2)).
    ref = jnp.transpose(jnp.matmul(x1, y1), (0, 1, 3, 2))
    assert out.shape == (B, H, N, M)
    assert jnp.allclose(out, ref, atol=1e-5, rtol=1e-5)

    print("KERNEL_OK")
</pallas_src>

<mosaic_0001>
module attributes {stable_mosaic.version = 11 : i64} {
  func.func @_bmm_t_kernel(%arg0: i32, %arg1: i32, %arg2: i32, %arg3: i32, %arg4: memref<4x16x32xf32, #tpu.memory_space<vmem>>, %arg5: memref<4x32x16xf32, #tpu.memory_space<vmem>>, %arg6: memref<4x16x16xf32, #tpu.memory_space<vmem>>, %arg7: memref<4x16x16xf32, #tpu.memory_space<vmem>>) attributes {dimension_semantics = [#tpu.dimension_semantics<parallel>, #tpu.dimension_semantics<parallel>, #tpu.dimension_semantics<parallel>, #tpu.dimension_semantics<arbitrary>], iteration_bounds = array<i64: 2, 1, 1, 1>, scalar_prefetch = 0 : i64, scratch_operands = 1 : i64, tpu.core_type = #tpu.core_type<tc>, window_params = [{transform_indices = @transform_0, window_bounds = array<i64: 4, 16, 32>}, {transform_indices = @transform_1, window_bounds = array<i64: 4, 32, 16>}, {transform_indices = @transform_2, window_bounds = array<i64: 4, 16, 16>}]} {
    %c0_i32 = arith.constant 0 : i32
    %0 = arith.cmpi eq, %arg3, %c0_i32 : i32
    %1 = arith.extui %0 : i1 to i32
    %c0_i32_0 = arith.constant 0 : i32
    %2 = arith.cmpi ne, %1, %c0_i32_0 : i32
    scf.if %2 {
      %cst_50 = arith.constant 0.000000e+00 : f32
      %50 = vector.broadcast %cst_50 : f32 to vector<4x16x16xf32>
      %c0_51 = arith.constant 0 : index
      %c0_52 = arith.constant 0 : index
      %c0_53 = arith.constant 0 : index
      %51 = vector.load %arg7[%c0_51, %c0_52, %c0_53] : memref<4x16x16xf32, #tpu.memory_space<vmem>>, vector<4x16x16xf32>
      tpu.vector_store %arg7[%c0_51, %c0_52, %c0_53], %50 {strides = array<i32>} : memref<4x16x16xf32, #tpu.memory_space<vmem>>, vector<4x16x16xf32>,
    } else {
    }
    %c0 = arith.constant 0 : index
    %c0_1 = arith.constant 0 : index
    %c0_2 = arith.constant 0 : index
    %3 = vector.load %arg7[%c0, %c0_1, %c0_2] : memref<4x16x16xf32, #tpu.memory_space<vmem>>, vector<1x16x16xf32>
    %4 = vector.shape_cast %3 : vector<1x16x16xf32> to vector<16x16xf32>
    %c0_3 = arith.constant 0 : index
    %c0_4 = arith.constant 0 : index
    %c0_5 = arith.constant 0 : index
    %5 = vector.load %arg4[%c0_3, %c0_4, %c0_5] : memref<4x16x32xf32, #tpu.memory_space<vmem>>, vector<1x16x32xf32>
    %6 = vector.shape_cast %5 : vector<1x16x32xf32> to vector<16x32xf32>
    %c0_6 = arith.constant 0 : index
    %c0_7 = arith.constant 0 : index
    %c0_8 = arith.constant 0 : index
    %7 = vector.load %arg5[%c0_6, %c0_7, %c0_8] : memref<4x32x16xf32, #tpu.memory_space<vmem>>, vector<1x32x16xf32>
    %8 = vector.shape_cast %7 : vector<1x32x16xf32> to vector<32x16xf32>
    %cst = arith.constant dense<0.000000e+00> : vector<16x16xf32>
    %9 = tpu.matmul %6, %8, %cst {dimension_numbers = #tpu.dot_dimension_numbers<[1], [0], [0], [1], [0, 0, 1, 1], [], []>} : vector<16x32xf32>, vector<32x16xf32>, vector<16x16xf32> -> vector<16x16xf32>
    %10 = arith.addf %4, %9 : vector<16x16xf32>
    %c0_9 = arith.constant 0 : index
    %c0_10 = arith.constant 0 : index
    %c0_11 = arith.constant 0 : index
    %11 = vector.load %arg7[%c0_9, %c0_10, %c0_11] : memref<4x16x16xf32, #tpu.memory_space<vmem>>, vector<1x16x16xf32>
    %12 = vector.shape_cast %11 : vector<1x16x16xf32> to vector<16x16xf32>
    %13 = vector.shape_cast %10 : vector<16x16xf32> to vector<1x16x16xf32>
    tpu.vector_store %arg7[%c0_9, %c0_10, %c0_11], %13 {strides = array<i32>} : memref<4x16x16xf32, #tpu.memory_space<vmem>>, vector<1x16x16xf32>,
    %c1 = arith.constant 1 : index
    %c0_12 = arith.constant 0 : index
    %c0_13 = arith.constant 0 : index
    %14 = vector.load %arg7[%c1, %c0_12, %c0_13] : memref<4x16x16xf32, #tpu.memory_space<vmem>>, vector<1x16x16xf32>
    %15 = vector.shape_cast %14 : vector<1x16x16xf32> to vector<16x16xf32>
    %c1_14 = arith.constant 1 : index
    %c0_15 = arith.constant 0 : index
    %c0_16 = arith.constant 0 : index
    %16 = vector.load %arg4[%c1_14, %c0_15, %c0_16] : memref<4x16x32xf32, #tpu.memory_space<vmem>>, vector<1x16x32xf32>
    %17 = vector.shape_cast %16 : vector<1x16x32xf32> to vector<16x32xf32>
    %c1_17 = arith.constant 1 : index
    %c0_18 = arith.constant 0 : index
    %c0_19 = arith.constant 0 : index
    %18 = vector.load %arg5[%c1_17, %c0_18, %c0_19] : memref<4x32x16xf32, #tpu.memory_space<vmem>>, vector<1x32x16xf32>
    %19 = vector.shape_cast %18 : vector<1x32x16xf32> to vector<32x16xf32>
    %cst_20 = arith.constant dense<0.000000e+00> : vector<16x16xf32>
    %20 = tpu.matmul %17, %19, %cst_20 {dimension_numbers = #tpu.dot_dimension_numbers<[1], [0], [0], [1], [0, 0, 1, 1], [], []>} : vector<16x32xf32>, vector<32x16xf32>, vector<16x16xf32> -> vector<16x16xf32>
    %21 = arith.addf %15, %20 : vector<16x16xf32>
    %c1_21 = arith.constant 1 : index
    %c0_22 = arith.constant 0 : index
    %c0_23 = arith.constant 0 : index
    %22 = vector.load %arg7[%c1_21, %c0_22, %c0_23] : memref<4x16x16xf32, #tpu.memory_space<vmem>>, vector<1x16x16xf32>
    %23 = vector.shape_cast %22 : vector<1x16x16xf32> to vector<16x16xf32>
    %24 = vector.shape_cast %21 : vector<16x16xf32> to vector<1x16x16xf32>
    tpu.vector_store %arg7[%c1_21, %c0_22, %c0_23], %24 {strides = array<i32>} : memref<4x16x16xf32, #tpu.memory_space<vmem>>, vector<1x16x16xf32>,
    %c2 = arith.constant 2 : index
    %c0_24 = arith.constant 0 : index
    %c0_25 = arith.constant 0 : index
    %25 = vector.load %arg7[%c2, %c0_24, %c0_25] : memref<4x16x16xf32, #tpu.memory_space<vmem>>, vector<1x16x16xf32>
    %26 = vector.shape_cast %25 : vector<1x16x16xf32> to vector<16x16xf32>
    %c2_26 = arith.constant 2 : index
    %c0_27 = arith.constant 0 : index
    %c0_28 = arith.constant 0 : index
    %27 = vector.load %arg4[%c2_26, %c0_27, %c0_28] : memref<4x16x32xf32, #tpu.memory_space<vmem>>, vector<1x16x32xf32>
    %28 = vector.shape_cast %27 : vector<1x16x32xf32> to vector<16x32xf32>
    %c2_29 = arith.constant 2 : index
    %c0_30 = arith.constant 0 : index
    %c0_31 = arith.constant 0 : index
    %29 = vector.load %arg5[%c2_29, %c0_30, %c0_31] : memref<4x32x16xf32, #tpu.memory_space<vmem>>, vector<1x32x16xf32>
    %30 = vector.shape_cast %29 : vector<1x32x16xf32> to vector<32x16xf32>
    %cst_32 = arith.constant dense<0.000000e+00> : vector<16x16xf32>
    %31 = tpu.matmul %28, %30, %cst_32 {dimension_numbers = #tpu.dot_dimension_numbers<[1], [0], [0], [1], [0, 0, 1, 1], [], []>} : vector<16x32xf32>, vector<32x16xf32>, vector<16x16xf32> -> vector<16x16xf32>
    %32 = arith.addf %26, %31 : vector<16x16xf32>
    %c2_33 = arith.constant 2 : index
    %c0_34 = arith.constant 0 : index
    %c0_35 = arith.constant 0 : index
    %33 = vector.load %arg7[%c2_33, %c0_34, %c0_35] : memref<4x16x16xf32, #tpu.memory_space<vmem>>, vector<1x16x16xf32>
    %34 = vector.shape_cast %33 : vector<1x16x16xf32> to vector<16x16xf32>
    %35 = vector.shape_cast %32 : vector<16x16xf32> to vector<1x16x16xf32>
    tpu.vector_store %arg7[%c2_33, %c0_34, %c0_35], %35 {strides = array<i32>} : memref<4x16x16xf32, #tpu.memory_space<vmem>>, vector<1x16x16xf32>,
    %c3 = arith.constant 3 : index
    %c0_36 = arith.constant 0 : index
    %c0_37 = arith.constant 0 : index
    %36 = vector.load %arg7[%c3, %c0_36, %c0_37] : memref<4x16x16xf32, #tpu.memory_space<vmem>>, vector<1x16x16xf32>
    %37 = vector.shape_cast %36 : vector<1x16x16xf32> to vector<16x16xf32>
    %c3_38 = arith.constant 3 : index
    %c0_39 = arith.constant 0 : index
    %c0_40 = arith.constant 0 : index
    %38 = vector.load %arg4[%c3_38, %c0_39, %c0_40] : memref<4x16x32xf32, #tpu.memory_space<vmem>>, vector<1x16x32xf32>
    %39 = vector.shape_cast %38 : vector<1x16x32xf32> to vector<16x32xf32>
    %c3_41 = arith.constant 3 : index
    %c0_42 = arith.constant 0 : index
    %c0_43 = arith.constant 0 : index
    %40 = vector.load %arg5[%c3_41, %c0_42, %c0_43] : memref<4x32x16xf32, #tpu.memory_space<vmem>>, vector<1x32x16xf32>
    %41 = vector.shape_cast %40 : vector<1x32x16xf32> to vector<32x16xf32>
    %cst_44 = arith.constant dense<0.000000e+00> : vector<16x16xf32>
    %42 = tpu.matmul %39, %41, %cst_44 {dimension_numbers = #tpu.dot_dimension_numbers<[1], [0], [0], [1], [0, 0, 1, 1], [], []>} : vector<16x32xf32>, vector<32x16xf32>, vector<16x16xf32> -> vector<16x16xf32>
    %43 = arith.addf %37, %42 : vector<16x16xf32>
    %c3_45 = arith.constant 3 : index
    %c0_46 = arith.constant 0 : index
    %c0_47 = arith.constant 0 : index
    %44 = vector.load %arg7[%c3_45, %c0_46, %c0_47] : memref<4x16x16xf32, #tpu.memory_space<vmem>>, vector<1x16x16xf32>
    %45 = vector.shape_cast %44 : vector<1x16x16xf32> to vector<16x16xf32>
    %46 = vector.shape_cast %43 : vector<16x16xf32> to vector<1x16x16xf32>
    tpu.vector_store %arg7[%c3_45, %c0_46, %c0_47], %46 {strides = array<i32>} : memref<4x16x16xf32, #tpu.memory_space<vmem>>, vector<1x16x16xf32>,
    %c0_i32_48 = arith.constant 0 : i32
    %47 = arith.cmpi eq, %arg3, %c0_i32_48 : i32
    %48 = arith.extui %47 : i1 to i32
    %c0_i32_49 = arith.constant 0 : i32
    %49 = arith.cmpi ne, %48, %c0_i32_49 : i32
    scf.if %49 {
      %c0_50 = arith.constant 0 : index
      %c0_51 = arith.constant 0 : index
      %c0_52 = arith.constant 0 : index
      %50 = vector.load %arg7[%c0_50, %c0_51, %c0_52] : memref<4x16x16xf32, #tpu.memory_space<vmem>>, vector<1x16x16xf32>
      %51 = vector.shape_cast %50 : vector<1x16x16xf32> to vector<16x16xf32>
      %52 = tpu.transpose %51, [1, 0] : vector<16x16xf32> -> vector<16x16xf32>
      %c0_53 = arith.constant 0 : index
      %c0_54 = arith.constant 0 : index
      %c0_55 = arith.constant 0 : index
      %53 = vector.load %arg6[%c0_53, %c0_54, %c0_55] : memref<4x16x16xf32, #tpu.memory_space<vmem>>, vector<1x16x16xf32>
      %54 = vector.shape_cast %53 : vector<1x16x16xf32> to vector<16x16xf32>
      %55 = vector.shape_cast %52 : vector<16x16xf32> to vector<1x16x16xf32>
      tpu.vector_store %arg6[%c0_53, %c0_54, %c0_55], %55 {strides = array<i32>} : memref<4x16x16xf32, #tpu.memory_space<vmem>>, vector<1x16x16xf32>,
      %c1_56 = arith.constant 1 : index
      %c0_57 = arith.constant 0 : index
      %c0_58 = arith.constant 0 : index
      %56 = vector.load %arg7[%c1_56, %c0_57, %c0_58] : memref<4x16x16xf32, #tpu.memory_space<vmem>>, vector<1x16x16xf32>
      %57 = vector.shape_cast %56 : vector<1x16x16xf32> to vector<16x16xf32>
      %58 = tpu.transpose %57, [1, 0] : vector<16x16xf32> -> vector<16x16xf32>
      %c1_59 = arith.constant 1 : index
      %c0_60 = arith.constant 0 : index
      %c0_61 = arith.constant 0 : index
      %59 = vector.load %arg6[%c1_59, %c0_60, %c0_61] : memref<4x16x16xf32, #tpu.memory_space<vmem>>, vector<1x16x16xf32>
      %60 = vector.shape_cast %59 : vector<1x16x16xf32> to vector<16x16xf32>
      %61 = vector.shape_cast %58 : vector<16x16xf32> to vector<1x16x16xf32>
      tpu.vector_store %arg6[%c1_59, %c0_60, %c0_61], %61 {strides = array<i32>} : memref<4x16x16xf32, #tpu.memory_space<vmem>>, vector<1x16x16xf32>,
      %c2_62 = arith.constant 2 : index
      %c0_63 = arith.constant 0 : index
      %c0_64 = arith.constant 0 : index
      %62 = vector.load %arg7[%c2_62, %c0_63, %c0_64] : memref<4x16x16xf32, #tpu.memory_space<vmem>>, vector<1x16x16xf32>
      %63 = vector.shape_cast %62 : vector<1x16x16xf32> to vector<16x16xf32>
      %64 = tpu.transpose %63, [1, 0] : vector<16x16xf32> -> vector<16x16xf32>
      %c2_65 = arith.constant 2 : index
      %c0_66 = arith.constant 0 : index
      %c0_67 = arith.constant 0 : index
      %65 = vector.load %arg6[%c2_65, %c0_66, %c0_67] : memref<4x16x16xf32, #tpu.memory_space<vmem>>, vector<1x16x16xf32>
      %66 = vector.shape_cast %65 : vector<1x16x16xf32> to vector<16x16xf32>
      %67 = vector.shape_cast %64 : vector<16x16xf32> to vector<1x16x16xf32>
      tpu.vector_store %arg6[%c2_65, %c0_66, %c0_67], %67 {strides = array<i32>} : memref<4x16x16xf32, #tpu.memory_space<vmem>>, vector<1x16x16xf32>,
      %c3_68 = arith.constant 3 : index
      %c0_69 = arith.constant 0 : index
      %c0_70 = arith.constant 0 : index
      %68 = vector.load %arg7[%c3_68, %c0_69, %c0_70] : memref<4x16x16xf32, #tpu.memory_space<vmem>>, vector<1x16x16xf32>
      %69 = vector.shape_cast %68 : vector<1x16x16xf32> to vector<16x16xf32>
      %70 = tpu.transpose %69, [1, 0] : vector<16x16xf32> -> vector<16x16xf32>
      %c3_71 = arith.constant 3 : index
      %c0_72 = arith.constant 0 : index
      %c0_73 = arith.constant 0 : index
      %71 = vector.load %arg6[%c3_71, %c0_72, %c0_73] : memref<4x16x16xf32, #tpu.memory_space<vmem>>, vector<1x16x16xf32>
      %72 = vector.shape_cast %71 : vector<1x16x16xf32> to vector<16x16xf32>
      %73 = vector.shape_cast %70 : vector<16x16xf32> to vector<1x16x16xf32>
      tpu.vector_store %arg6[%c3_71, %c0_72, %c0_73], %73 {strides = array<i32>} : memref<4x16x16xf32, #tpu.memory_space<vmem>>, vector<1x16x16xf32>,
    } else {
    }
    return
  }
  func.func @transform_0(%arg0: i32, %arg1: i32, %arg2: i32, %arg3: i32) -> (i32, i32, i32) {
    %c0_i32 = arith.constant 0 : i32
    return %arg0, %arg2, %arg3 : i32, i32, i32
  }
  func.func @transform_1(%arg0: i32, %arg1: i32, %arg2: i32, %arg3: i32) -> (i32, i32, i32) {
    %c0_i32 = arith.constant 0 : i32
    return %arg0, %arg3, %arg1 : i32, i32, i32
  }
  func.func @transform_2(%arg0: i32, %arg1: i32, %arg2: i32, %arg3: i32) -> (i32, i32, i32) {
    %c0_i32 = arith.constant 0 : i32
    return %arg0, %arg1, %arg2 : i32, i32, i32
  }
}

</mosaic_0001>

<llo_original>
// kernel: tpu_custom_call.1
$region0: #{tpu_custom_call.1}
  #allocation0 [shape = 'u32[]', space=smem, size = 0x4, offset = 0x4, fixed_abs, tag = 'smem constant byte address 0x4 - core index']
  #allocation1 [shape = 'u32[144,128]{1,0:T(1,128)}', space=vmem, size = 0x12000, scoped, tag = 'internal scratch']
  #allocation2 [shape = 'f32[4,16,16]{2,1,0:T(8,128)}', space=vmem, size = 0x8000, scoped, tag = 'scratch operand']
  %s0 = inlined_call_operand.vmem [shape: f32[8,16,32], index: 0, kind: input, shape index: {}]
  %s1 = inlined_call_operand.vmem [shape: f32[8,32,16], index: 1, kind: input, shape index: {}]
  %s2 = inlined_call_operand.hbm [shape: f32[8,16,16], index: 2, kind: output, shape index: {}]
  %s3 = sld [smem:[#allocation0]]
  $region49: #{tpu_custom_call.1} parent=0
    _
  %s5 = ssub.s32 1, %s3
  %s6 = scalar_select 0, %s5, %s3
  $region1: #{tpu_custom_call.1} parent=0
    #allocation3 [shape = 'u8[65536]{0}', space=vmem, size = 0x10000, scoped, tag = 'output window, operand 0']
    #allocation4 [shape = 's32[2]{0}', space=sflag, size = 0x8, scoped, tag = 'scoped memory for tpu_custom_call.1']
    %7 = vsyncpa [#allocation4], 0
    %s8 = scalar_lea.sflag [#allocation4], 1
    %9 = vsyncpa %s8, 0
    loop: start=0, step=1, limit=4
    $region2: #{tpu_custom_call.1} parent=1 // loop_pre_header
      _
    $region3: #{tpu_custom_call.1} parent=1 // loop_header
      %s11 = sphi 0, %s15
      %p12 = scmp.ge.s32.totalorder %s11, 4
      %s18 = sphi 0, %s44
      %s19 = sphi 0, %s40
      %s20 = sphi 0, %s36
      %s21 = sphi 0, %s32
      %s22 = sphi 0, %s18
      %s23 = sphi 0, %s19
      %s24 = sphi 0, %s20
      %s25 = sphi 0, %s21
      %s26 = sphi 0, %s22
      %s27 = sphi 0, %s23
      %s28 = sphi 0, %s24
      %s29 = sphi 0, %s25
      %s51 = sphi 0, %s53
      %s54 = sphi 0, %s51
      %s55 = sphi 0, %s54
      %s71 = sphi 0, %s55
      %s81 = sphi 0, %s83
      %s84 = sphi 0, %s81
      %s85 = sphi 0, %s84
      %s101 = sphi 0, %s85
      %s111 = sphi 0, %s113
      %s114 = sphi 0, %s111
      %s115 = sphi 0, %s114
      %s131 = sphi 0, %s115
    $region4: #{tpu_custom_call.1} parent=1 // loop_header_branch
      %14 = sbr.rel (%p12) target = $region8
    $region5: #{tpu_custom_call.1} parent=1 // loop_body
      %s16 = ssub.s32 %s11, 1
      %s17 = ssub.s32 %s11, 2
      %s30 = sadd.s32 1, %s21
      %p31 = scmp.ge.s32.totalorder %s30, 1
      %s32 = scalar_select %p31, 0, %s30
      %s33 = sadd.s32 1, %s20
      %s34 = scalar_select %p31, %s33, %s20
      %p35 = scmp.ge.s32.totalorder %s34, 1
      %s36 = scalar_select %p35, 0, %s34
      %s37 = sadd.s32 1, %s19
      %s38 = scalar_select %p35, %s37, %s19
      %p39 = scmp.ge.s32.totalorder %s38, 1
      %s40 = scalar_select %p39, 0, %s38
      %s41 = sadd.s32 1, %s18
      %s42 = scalar_select %p39, %s41, %s18
      %p43 = scmp.ge.s32.totalorder %s42, 2
      %s44 = scalar_select %p43, 0, %s42
      %s45 = ssub.s32 %s18, %s44
      %s46 = ssub.s32 %s20, %s36
      %s47 = sor.u32 %s45, %s46
      %s48 = ssub.s32 %s21, %s32
      %s49 = sor.u32 %s47, %s48
      %p50 = scmp.eq.s32.totalorder %s49, 0
      %s52 = sadd.s32 %s51, 1
      %s53 = scalar_select %p50, %s51, %s52
      %p56 = pneg %p50
      %p57 = scmp.eq.s32.totalorder %s11, 1
      %p58 = por %p56, %p57
      %p59 = scmp.ne.s32.totalorder %s51, %s54
      %p60 = scmp.eq.s32.totalorder %s11, 0
      %p61 = por %p59, %p60
      %p62 = scmp.ne.s32.totalorder %s51, %s54
      %p63 = scmp.eq.s32.totalorder %s16, 1
      %p64 = por %p62, %p63
      %p65 = scmp.ne.s32.totalorder %s54, %s55
      %p66 = scmp.eq.s32.totalorder %s16, 0
      %p67 = por %p65, %p66
      %p68 = scmp.ne.s32.totalorder %s54, %s55
      %p69 = scmp.eq.s32.totalorder %s17, 1
      %p70 = por %p68, %p69
      %p72 = scmp.ne.s32.totalorder %s55, %s71
      %p73 = scmp.eq.s32.totalorder %s17, 0
      %p74 = por %p72, %p73
      %s75 = ssub.s32 %s18, %s44
      %s76 = ssub.s32 %s21, %s32
      %s77 = sor.u32 %s75, %s76
      %s78 = ssub.s32 %s19, %s40
      %s79 = sor.u32 %s77, %s78
      %p80 = scmp.eq.s32.totalorder %s79, 0
      %s82 = sadd.s32 %s81, 1
      %s83 = scalar_select %p80, %s81, %s82
      %p86 = pneg %p80
      %p87 = scmp.eq.s32.totalorder %s11, 1
      %p88 = por %p86, %p87
      %p89 = scmp.ne.s32.totalorder %s81, %s84
      %p90 = scmp.eq.s32.totalorder %s11, 0
      %p91 = por %p89, %p90
      %p92 = scmp.ne.s32.totalorder %s81, %s84
      %p93 = scmp.eq.s32.totalorder %s16, 1
      %p94 = por %p92, %p93
      %p95 = scmp.ne.s32.totalorder %s84, %s85
      %p96 = scmp.eq.s32.totalorder %s16, 0
      %p97 = por %p95, %p96
      %p98 = scmp.ne.s32.totalorder %s84, %s85
      %p99 = scmp.eq.s32.totalorder %s17, 1
      %p100 = por %p98, %p99
      %p102 = scmp.ne.s32.totalorder %s85, %s101
      %p103 = scmp.eq.s32.totalorder %s17, 0
      %p104 = por %p102, %p103
      %s105 = ssub.s32 %s18, %s44
      %s106 = ssub.s32 %s19, %s40
      %s107 = sor.u32 %s105, %s106
      %s108 = ssub.s32 %s20, %s36
      %s109 = sor.u32 %s107, %s108
      %p110 = scmp.eq.s32.totalorder %s109, 0
      %s112 = sadd.s32 %s111, 1
      %s113 = scalar_select %p110, %s111, %s112
      %p116 = pneg %p110
      %p117 = scmp.eq.s32.totalorder %s11, 1
      %p118 = por %p116, %p117
      %p119 = scmp.ne.s32.totalorder %s111, %s114
      %p120 = scmp.eq.s32.totalorder %s11, 0
      %p121 = por %p119, %p120
      %p122 = scmp.ne.s32.totalorder %s111, %s114
      %p123 = scmp.eq.s32.totalorder %s16, 1
      %p124 = por %p122, %p123
      %p125 = scmp.ne.s32.totalorder %s114, %s115
      %p126 = scmp.eq.s32.totalorder %s16, 0
      %p127 = por %p125, %p126
      %p128 = scmp.ne.s32.totalorder %s114, %s115
      %p129 = scmp.eq.s32.totalorder %s17, 1
      %p130 = por %p128, %p129
      %p132 = scmp.ne.s32.totalorder %s115, %s131
      %p133 = scmp.eq.s32.totalorder %s17, 0
      %p134 = por %p132, %p133
      %p135 = scmp.le.s32.totalorder 1, %s11
      %p136 = scmp.lt.s32.totalorder %s11, 3
      %p137 = pnand %p135, %p136
      %p138 = pneg %p137
      // Predicated region
      $region9: #{tpu_custom_call.1} parent=5 // pred_check
        _
      $region10: #{tpu_custom_call.1} parent=5 // pred_check_branch
        %140 = sbr.rel (%p137) target = $region12
      $region11: #{tpu_custom_call.1} parent=5 // pred_region
        %s141 = ssub.s32 %s11, 1
      $region12: #{tpu_custom_call.1} parent=5 // pred_fallthru
        _
      %p142 = scmp.lt.s32.totalorder %s11, 2
      // Predicated region
      $region13: #{tpu_custom_call.1} parent=5 // pred_check
        %p143 = pneg %p142
      $region14: #{tpu_custom_call.1} parent=5 // pred_check_branch
        %145 = sbr.rel (%p143) target = $region16
      $region15: #{tpu_custom_call.1} parent=5 // pred_region
        // Predicated region
        $region17: #{tpu_custom_call.1} parent=15 // pred_check
          %p146 = pneg %p61
        $region18: #{tpu_custom_call.1} parent=15 // pred_check_branch
          %148 = sbr.rel (%p146) target = $region20
        $region19: #{tpu_custom_call.1} parent=15 // pred_region
          %s149 = smul.u32 4, %s18
          %s150 = smul.u32 2, %s20
          %p151 = scmp.lt.s32.totalorder %s149, 7
          %s152 = scalar_select %p151, %s149, 7
          %p153 = scmp.lt.s32.totalorder %s150, 1
          %s154 = scalar_select %p153, %s150, 1
          %p155 = scmp.lt.s32.totalorder %s21, 0
          %s156 = scalar_select %p155, %s21, 0
          %s157 = sadd.s32 %s156, %s154
          %s158 = smul.addr %s152, 2
          %s159 = sadd.s32 %s157, %s158
          %s160 = smul.addr %s159, 8
          %s161 = scalar_lea.vmem %s0, %s160
          %s162 = smul.u32 4, %s18
          %s163 = smul.u32 2, %s20
        $region20: #{tpu_custom_call.1} parent=15 // pred_fallthru
          _
        // Predicated region
        $region21: #{tpu_custom_call.1} parent=15 // pred_check
          %p164 = pneg %p91
        $region22: #{tpu_custom_call.1} parent=15 // pred_check_branch
          %166 = sbr.rel (%p164) target = $region24
        $region23: #{tpu_custom_call.1} parent=15 // pred_region
          %s167 = smul.u32 4, %s18
          %s168 = smul.u32 4, %s21
          %p169 = scmp.lt.s32.totalorder %s167, 7
          %s170 = scalar_select %p169, %s167, 7
          %p171 = scmp.lt.s32.totalorder %s168, 3
          %s172 = scalar_select %p171, %s168, 3
          %p173 = scmp.lt.s32.totalorder %s19, 0
          %s174 = scalar_select %p173, %s19, 0
          %s175 = sadd.s32 %s174, %s172
          %s176 = smul.addr %s170, 4
          %s177 = sadd.s32 %s175, %s176
          %s178 = smul.addr %s177, 8
          %s179 = scalar_lea.vmem %s1, %s178
          %s180 = smul.u32 4, %s18
          %s181 = smul.u32 4, %s21
        $region24: #{tpu_custom_call.1} parent=15 // pred_fallthru
          _
      $region16: #{tpu_custom_call.1} parent=5 // pred_fallthru
        _
      %p182 = scmp.le.s32.totalorder 1, %s11
      %p183 = scmp.lt.s32.totalorder %s11, 3
      %p184 = pnand %p182, %p183
      %p185 = pneg %p184
      // Predicated region
      $region25: #{tpu_custom_call.1} parent=5 // pred_check
        _
      $region26: #{tpu_custom_call.1} parent=5 // pred_check_branch
        %187 = sbr.rel (%p184) target = $region28
      $region27: #{tpu_custom_call.1} parent=5 // pred_region
        %s188 = ssub.s32 %s11, 1
        %s189 = smul.u32 4, %s22
        %s190 = smul.u32 2, %s24
        %p191 = scmp.lt.s32.totalorder %s189, 7
        %s192 = scalar_select %p191, %s189, 7
        %p193 = scmp.lt.s32.totalorder %s190, 1
        %s194 = scalar_select %p193, %s190, 1
        %p195 = scmp.lt.s32.totalorder %s25, 0
        %s196 = scalar_select %p195, %s25, 0
        %s197 = sadd.s32 %s196, %s194
        %s198 = smul.addr %s192, 2
        %s199 = sadd.s32 %s197, %s198
        %s200 = smul.addr %s199, 8
        %s201 = scalar_lea.vmem %s0, %s200
        %p202 = pneg %p67
        %p203 = pneg %p64
        %s204 = smul.u32 4, %s22
        %s205 = smul.u32 4, %s25
        %p206 = scmp.lt.s32.totalorder %s204, 7
        %s207 = scalar_select %p206, %s204, 7
        %p208 = scmp.lt.s32.totalorder %s205, 3
        %s209 = scalar_select %p208, %s205, 3
        %p210 = scmp.lt.s32.totalorder %s23, 0
        %s211 = scalar_select %p210, %s23, 0
        %s212 = sadd.s32 %s211, %s209
        %s213 = smul.addr %s207, 4
        %s214 = sadd.s32 %s212, %s213
        %s215 = smul.addr %s214, 8
        %s216 = scalar_lea.vmem %s1, %s215
        %p217 = pneg %p97
        %p218 = pneg %p94
        %p219 = pneg %p127
        %p220 = pneg %p124
        %s221 = sand.u32 %s114, 1
        %s222 = scalar_lea.sflag [#allocation4], %s221
        %s223 = sand.u32 %s114, 1
        %s224 = smul.addr %s223, 64
        %s225 = scalar_lea.vmem [#allocation3], %s224
        %s226 = smul.u32 4, %s22
        %s227 = smul.u32 2, %s24
        %p228 = scmp.lt.s32.totalorder %s226, 7
        %s229 = scalar_select %p228, %s226, 7
        %p230 = scmp.lt.s32.totalorder %s227, 1
        %s231 = scalar_select %p230, %s227, 1
        %p232 = scmp.lt.s32.totalorder %s25, 0
        %s233 = scalar_select %p232, %s25, 0
        %s234 = sadd.s32 %s233, %s231
        %s235 = smul.addr %s229, 2
        %s236 = sadd.s32 %s234, %s235
        %s237 = smul.addr %s236, 8
        %s238 = scalar_lea.vmem %s0, %s237
        %s239 = smul.u32 4, %s22
        %s240 = smul.u32 2, %s24
        %s241 = smul.u32 4, %s22
        %s242 = smul.u32 4, %s25
        %p243 = scmp.lt.s32.totalorder %s241, 7
        %s244 = scalar_select %p243, %s241, 7
        %p245 = scmp.lt.s32.totalorder %s242, 3
        %s246 = scalar_select %p245, %s242, 3
        %p247 = scmp.lt.s32.totalorder %s23, 0
        %s248 = scalar_select %p247, %s23, 0
        %s249 = sadd.s32 %s248, %s246
        %s250 = smul.addr %s244, 4
        %s251 = sadd.s32 %s249, %s250
        %s252 = smul.addr %s251, 8
        %s253 = scalar_lea.vmem %s1, %s252
        %s254 = smul.u32 4, %s22
        %s255 = smul.u32 4, %s25
        %s256 = smul.u32 4, %s22
        %s257 = smul.u32 2, %s23
        %p258 = scmp.eq.s32.totalorder %s25, 0
        // Predicated region
        $region29: #{tpu_custom_call.1} parent=27 // pred_check
          %p259 = pneg %p258
        $region30: #{tpu_custom_call.1} parent=27 // pred_check_branch
          %261 = sbr.rel (%p259) target = $region32
        $region31: #{tpu_custom_call.1} parent=27 // pred_region
          %vm262 = vcmask 130048
          %263 = vst.msk [vmem:[#allocation2] sm:$0xff] %vm262, 0.0
          %264 = vst.msk [vmem:[#allocation2 + $0x8] sm:$0xff] %vm262, 0.0
          %265 = vst.msk [vmem:[#allocation2 + $0x10] sm:$0xff] %vm262, 0.0
          %266 = vst.msk [vmem:[#allocation2 + $0x18] sm:$0xff] %vm262, 0.0
          %267 = vst.msk [vmem:[#allocation2 + $0x20] sm:$0xff] %vm262, 0.0
          %268 = vst.msk [vmem:[#allocation2 + $0x28] sm:$0xff] %vm262, 0.0
          %269 = vst.msk [vmem:[#allocation2 + $0x30] sm:$0xff] %vm262, 0.0
          %270 = vst.msk [vmem:[#allocation2 + $0x38] sm:$0xff] %vm262, 0.0
        $region32: #{tpu_custom_call.1} parent=27 // pred_fallthru
          _
        %v271 = vld [vmem:[#allocation2] sm:$0xff]
        %v272 = vld [vmem:[#allocation2 + $0x8] sm:$0xff]
        %v273 = vld [vmem:[%s238] sm:$0xff]
        %v274 = vld [vmem:[%s238 + $0x8] sm:$0xff]
        %v275 = vld [vmem:[%s253] sm:$0xff]
        %v276 = vld [vmem:[%s253 + $0x8] sm:$0xff]
        %v277 = vld [vmem:[%s253 + $0x10] sm:$0xff]
        %v278 = vld [vmem:[%s253 + $0x18] sm:$0xff]
        %vm279 = vcmask 261120
        %v281 = vsel %vm279, %v273, 0
        %v284 = vsel %vm279, %v274, 0
        %286 = vmatprep.subr.mxu0 0.0
        %287 = vmatpush1.msra.mxu0 %v275
        %288 = vmatprep.subr.mxu0 0.0
        %289 = vmatpush1.msra.mxu0 %v276
        %290 = vmatprep.subr.mxu0 0.0
        %291 = vmatpush1.msra.mxu0 %v277
        %292 = vmatprep.subr.mxu0 0.0
        %293 = vmatpush1.msra.mxu0 %v278
        %294 = vmatprep.subr.mxu0 0.0
        %295 = vmatpush1.msra.mxu0 0.0
        %296 = vmatprep.subr.mxu0 0.0
        %297 = vmatpush1.msra.mxu0 0.0
        %298 = vmatprep.subr.mxu0 0.0
        %299 = vmatpush1.msra.mxu0 0.0
        %300 = vmatprep.subr.mxu0 0.0
        %301 = vmatpush1.msra.mxu0 0.0
        %302 = vmatprep.subr.mxu0 0.0
        %303 = vmatpush1.msra.mxu0 0.0
        %304 = vmatprep.subr.mxu0 0.0
        %305 = vmatpush1.msra.mxu0 0.0
        %306 = vmatprep.subr.mxu0 0.0
        %307 = vmatpush1.msra.mxu0 0.0
        %308 = vmatprep.subr.mxu0 0.0
        %309 = vmatpush1.msra.mxu0 0.0
        %310 = vmatprep.subr.mxu0 0.0
        %311 = vmatpush1.msra.mxu0 0.0
        %312 = vmatprep.subr.mxu0 0.0
        %313 = vmatpush1.msra.mxu0 0.0
        %314 = vmatprep.subr.mxu0 0.0
        %315 = vmatpush1.msra.mxu0 0.0
        %316 = vmatprep.subr.mxu0 0.0
        %317 = vmatpush1.msra.mxu0 0.0
        %318 = vmatprep.subr.mxu0 0.0
        %319 = vmatpush1.msra.mxu0 0.0
        %320 = vmatprep.subr.mxu0 0.0
        %321 = vmatpush1.msra.mxu0 0.0
        %322 = vmatprep.subr.mxu0 0.0
        %323 = vmatpush1.msra.mxu0 0.0
        %324 = vmatprep.subr.mxu0 0.0
        %325 = vmatpush1.msra.mxu0 0.0
        %326 = vmatprep.subr.mxu0 0.0
        %327 = vmatpush1.msra.mxu0 0.0
        %328 = vmatprep.subr.mxu0 0.0
        %329 = vmatpush1.msra.mxu0 0.0
        %330 = vmatprep.subr.mxu0 0.0
        %331 = vmatpush1.msra.mxu0 0.0
        %332 = vmatprep.subr.mxu0 0.0
        %333 = vmatpush1.msra.mxu0 0.0
        %334 = vmatprep.subr.mxu0 0.0
        %335 = vmatpush1.msra.mxu0 0.0
        %336 = vmatprep.subr.mxu0 0.0
        %337 = vmatpush1.msra.mxu0 0.0
        %338 = vmatprep.subr.mxu0 0.0
        %339 = vmatpush1.msra.mxu0 0.0
        %340 = vmatprep.subr.mxu0 0.0
        %341 = vmatpush1.msra.mxu0 0.0
        %342 = vmatprep.subr.mxu0 0.0
        %343 = vmatpush1.msra.mxu0 0.0
        %344 = vmatprep.subr.mxu0 0.0
        %345 = vmatpush1.msra.mxu0 0.0
        %346 = vmatprep.subr.mxu0 0.0
        %347 = vmatpush1.msra.mxu0 0.0
        %348 = vmatprep.subr.mxu0 0.0
        %349 = vmatpush1.msra.mxu0 0.0
        %350 = vmatprep.mubr.f32.mxu0 0.0
        %351 = vmatmul.mubr.f32.gmra.mrb[0].mxu0 %v281
        %v352 = vpop.f32.mrb[0].mxu0
        %v353 = vadd.f32 0.0, %v352
        %v354 = vpop.f32.mrb[0].mxu0
        %355 = vmatprep.mubr.f32.mxu0 0.0
        %356 = vmatmul.mubr.f32.gmra.mrb[0].mxu0 %v284
        %v357 = vpop.f32.mrb[0].mxu0
        %v358 = vadd.f32 0.0, %v357
        %v359 = vpop.f32.mrb[0].mxu0
        %360 = vdwg.mxu0
        %v361 = vadd.f32 %v271, %v353
        %v362 = vadd.f32 %v272, %v358
        %vm363 = vcmask 130048
        %364 = vst.msk [vmem:[#allocation2] sm:$0xff] %vm363, %v361
        %365 = vst.msk [vmem:[#allocation2 + $0x8] sm:$0xff] %vm363, %v362
        %s366 = scalar_lea.vmem [#allocation2], 16
        %v367 = vld [vmem:[%s366] sm:$0xff]
        %v368 = vld [vmem:[%s366 + $0x8] sm:$0xff]
        %s369 = scalar_lea.vmem %s238, 16
        %v370 = vld [vmem:[%s369] sm:$0xff]
        %v371 = vld [vmem:[%s369 + $0x8] sm:$0xff]
        %s372 = scalar_lea.vmem %s253, 32
        %v373 = vld [vmem:[%s372] sm:$0xff]
        %v374 = vld [vmem:[%s372 + $0x8] sm:$0xff]
        %v375 = vld [vmem:[%s372 + $0x10] sm:$0xff]
        %v376 = vld [vmem:[%s372 + $0x18] sm:$0xff]
        %v378 = vsel %vm279, %v370, 0
        %v381 = vsel %vm279, %v371, 0
        %383 = vmatprep.subr.mxu0 0.0
        %384 = vmatpush1.msra.mxu0 %v373
        %385 = vmatprep.subr.mxu0 0.0
        %386 = vmatpush1.msra.mxu0 %v374
        %387 = vmatprep.subr.mxu0 0.0
        %388 = vmatpush1.msra.mxu0 %v375
        %389 = vmatprep.subr.mxu0 0.0
        %390 = vmatpush1.msra.mxu0 %v376
        %391 = vmatprep.subr.mxu0 0.0
        %392 = vmatpush1.msra.mxu0 0.0
        %393 = vmatprep.subr.mxu0 0.0
        %394 = vmatpush1.msra.mxu0 0.0
        %395 = vmatprep.subr.mxu0 0.0
        %396 = vmatpush1.msra.mxu0 0.0
        %397 = vmatprep.subr.mxu0 0.0
        %398 = vmatpush1.msra.mxu0 0.0
        %399 = vmatprep.subr.mxu0 0.0
        %400 = vmatpush1.msra.mxu0 0.0
        %401 = vmatprep.subr.mxu0 0.0
        %402 = vmatpush1.msra.mxu0 0.0
        %403 = vmatprep.subr.mxu0 0.0
        %404 = vmatpush1.msra.mxu0 0.0
        %405 = vmatprep.subr.mxu0 0.0
        %406 = vmatpush1.msra.mxu0 0.0
        %407 = vmatprep.subr.mxu0 0.0
        %408 = vmatpush1.msra.mxu0 0.0
        %409 = vmatprep.subr.mxu0 0.0
        %410 = vmatpush1.msra.mxu0 0.0
        %411 = vmatprep.subr.mxu0 0.0
        %412 = vmatpush1.msra.mxu0 0.0
        %413 = vmatprep.subr.mxu0 0.0
        %414 = vmatpush1.msra.mxu0 0.0
        %415 = vmatprep.subr.mxu0 0.0
        %416 = vmatpush1.msra.mxu0 0.0
        %417 = vmatprep.subr.mxu0 0.0
        %418 = vmatpush1.msra.mxu0 0.0
        %419 = vmatprep.subr.mxu0 0.0
        %420 = vmatpush1.msra.mxu0 0.0
        %421 = vmatprep.subr.mxu0 0.0
        %422 = vmatpush1.msra.mxu0 0.0
        %423 = vmatprep.subr.mxu0 0.0
        %424 = vmatpush1.msra.mxu0 0.0
        %425 = vmatprep.subr.mxu0 0.0
        %426 = vmatpush1.msra.mxu0 0.0
        %427 = vmatprep.subr.mxu0 0.0
        %428 = vmatpush1.msra.mxu0 0.0
        %429 = vmatprep.subr.mxu0 0.0
        %430 = vmatpush1.msra.mxu0 0.0
        %431 = vmatprep.subr.mxu0 0.0
        %432 = vmatpush1.msra.mxu0 0.0
        %433 = vmatprep.subr.mxu0 0.0
        %434 = vmatpush1.msra.mxu0 0.0
        %435 = vmatprep.subr.mxu0 0.0
        %436 = vmatpush1.msra.mxu0 0.0
        %437 = vmatprep.subr.mxu0 0.0
        %438 = vmatpush1.msra.mxu0 0.0
        %439 = vmatprep.subr.mxu0 0.0
        %440 = vmatpush1.msra.mxu0 0.0
        %441 = vmatprep.subr.mxu0 0.0
        %442 = vmatpush1.msra.mxu0 0.0
        %443 = vmatprep.subr.mxu0 0.0
        %444 = vmatpush1.msra.mxu0 0.0
        %445 = vmatprep.subr.mxu0 0.0
        %446 = vmatpush1.msra.mxu0 0.0
        %447 = vmatprep.mubr.f32.mxu0 0.0
        %448 = vmatmul.mubr.f32.gmra.mrb[0].mxu0 %v378
        %v449 = vpop.f32.mrb[0].mxu0
        %v450 = vadd.f32 0.0, %v449
        %v451 = vpop.f32.mrb[0].mxu0
        %452 = vmatprep.mubr.f32.mxu0 0.0
        %453 = vmatmul.mubr.f32.gmra.mrb[0].mxu0 %v381
        %v454 = vpop.f32.mrb[0].mxu0
        %v455 = vadd.f32 0.0, %v454
        %v456 = vpop.f32.mrb[0].mxu0
        %457 = vdwg.mxu0
        %v458 = vadd.f32 %v367, %v450
        %v459 = vadd.f32 %v368, %v455
        %460 = vst.msk [vmem:[%s366] sm:$0xff] %vm363, %v458
        %461 = vst.msk [vmem:[%s366 + $0x8] sm:$0xff] %vm363, %v459
        %s462 = scalar_lea.vmem [#allocation2], 32
        %v463 = vld [vmem:[%s462] sm:$0xff]
        %v464 = vld [vmem:[%s462 + $0x8] sm:$0xff]
        %s465 = scalar_lea.vmem %s238, 32
        %v466 = vld [vmem:[%s465] sm:$0xff]
        %v467 = vld [vmem:[%s465 + $0x8] sm:$0xff]
        %s468 = scalar_lea.vmem %s253, 64
        %v469 = vld [vmem:[%s468] sm:$0xff]
        %v470 = vld [vmem:[%s468 + $0x8] sm:$0xff]
        %v471 = vld [vmem:[%s468 + $0x10] sm:$0xff]
        %v472 = vld [vmem:[%s468 + $0x18] sm:$0xff]
        %v474 = vsel %vm279, %v466, 0
        %v477 = vsel %vm279, %v467, 0
        %479 = vmatprep.subr.mxu0 0.0
        %480 = vmatpush1.msra.mxu0 %v469
        %481 = vmatprep.subr.mxu0 0.0
        %482 = vmatpush1.msra.mxu0 %v470
        %483 = vmatprep.subr.mxu0 0.0
        %484 = vmatpush1.msra.mxu0 %v471
        %485 = vmatprep.subr.mxu0 0.0
        %486 = vmatpush1.msra.mxu0 %v472
        %487 = vmatprep.subr.mxu0 0.0
        %488 = vmatpush1.msra.mxu0 0.0
        %489 = vmatprep.subr.mxu0 0.0
        %490 = vmatpush1.msra.mxu0 0.0
        %491 = vmatprep.subr.mxu0 0.0
        %492 = vmatpush1.msra.mxu0 0.0
        %493 = vmatprep.subr.mxu0 0.0
        %494 = vmatpush1.msra.mxu0 0.0
        %495 = vmatprep.subr.mxu0 0.0
        %496 = vmatpush1.msra.mxu0 0.0
        %497 = vmatprep.subr.mxu0 0.0
        %498 = vmatpush1.msra.mxu0 0.0
        %499 = vmatprep.subr.mxu0 0.0
        %500 = vmatpush1.msra.mxu0 0.0
        %501 = vmatprep.subr.mxu0 0.0
        %502 = vmatpush1.msra.mxu0 0.0
        %503 = vmatprep.subr.mxu0 0.0
        %504 = vmatpush1.msra.mxu0 0.0
        %505 = vmatprep.subr.mxu0 0.0
        %506 = vmatpush1.msra.mxu0 0.0
        %507 = vmatprep.subr.mxu0 0.0
        %508 = vmatpush1.msra.mxu0 0.0
        %509 = vmatprep.subr.mxu0 0.0
        %510 = vmatpush1.msra.mxu0 0.0
        %511 = vmatprep.subr.mxu0 0.0
        %512 = vmatpush1.msra.mxu0 0.0
        %513 = vmatprep.subr.mxu0 0.0
        %514 = vmatpush1.msra.mxu0 0.0
        %515 = vmatprep.subr.mxu0 0.0
        %516 = vmatpush1.msra.mxu0 0.0
        %517 = vmatprep.subr.mxu0 0.0
        %518 = vmatpush1.msra.mxu0 0.0
        %519 = vmatprep.subr.mxu0 0.0
        %520 = vmatpush1.msra.mxu0 0.0
        %521 = vmatprep.subr.mxu0 0.0
        %522 = vmatpush1.msra.mxu0 0.0
        %523 = vmatprep.subr.mxu0 0.0
        %524 = vmatpush1.msra.mxu0 0.0
        %525 = vmatprep.subr.mxu0 0.0
        %526 = vmatpush1.msra.mxu0 0.0
        %527 = vmatprep.subr.mxu0 0.0
        %528 = vmatpush1.msra.mxu0 0.0
        %529 = vmatprep.subr.mxu0 0.0
        %530 = vmatpush1.msra.mxu0 0.0
        %531 = vmatprep.subr.mxu0 0.0
        %532 = vmatpush1.msra.mxu0 0.0
        %533 = vmatprep.subr.mxu0 0.0
        %534 = vmatpush1.msra.mxu0 0.0
        %535 = vmatprep.subr.mxu0 0.0
        %536 = vmatpush1.msra.mxu0 0.0
        %537 = vmatprep.subr.mxu0 0.0
        %538 = vmatpush1.msra.mxu0 0.0
        %539 = vmatprep.subr.mxu0 0.0
        %540 = vmatpush1.msra.mxu0 0.0
        %541 = vmatprep.subr.mxu0 0.0
        %542 = vmatpush1.msra.mxu0 0.0
        %543 = vmatprep.mubr.f32.mxu0 0.0
        %544 = vmatmul.mubr.f32.gmra.mrb[0].mxu0 %v474
        %v545 = vpop.f32.mrb[0].mxu0
        %v546 = vadd.f32 0.0, %v545
        %v547 = vpop.f32.mrb[0].mxu0
        %548 = vmatprep.mubr.f32.mxu0 0.0
        %549 = vmatmul.mubr.f32.gmra.mrb[0].mxu0 %v477
        %v550 = vpop.f32.mrb[0].mxu0
        %v551 = vadd.f32 0.0, %v550
        %v552 = vpop.f32.mrb[0].mxu0
        %553 = vdwg.mxu0
        %v554 = vadd.f32 %v463, %v546
        %v555 = vadd.f32 %v464, %v551
        %556 = vst.msk [vmem:[%s462] sm:$0xff] %vm363, %v554
        %557 = vst.msk [vmem:[%s462 + $0x8] sm:$0xff] %vm363, %v555
        %s558 = scalar_lea.vmem [#allocation2], 48
        %v559 = vld [vmem:[%s558] sm:$0xff]
        %v560 = vld [vmem:[%s558 + $0x8] sm:$0xff]
        %s561 = scalar_lea.vmem %s238, 48
        %v562 = vld [vmem:[%s561] sm:$0xff]
        %v563 = vld [vmem:[%s561 + $0x8] sm:$0xff]
        %s564 = scalar_lea.vmem %s253, 96
        %v565 = vld [vmem:[%s564] sm:$0xff]
        %v566 = vld [vmem:[%s564 + $0x8] sm:$0xff]
        %v567 = vld [vmem:[%s564 + $0x10] sm:$0xff]
        %v568 = vld [vmem:[%s564 + $0x18] sm:$0xff]
        %v570 = vsel %vm279, %v562, 0
        %v573 = vsel %vm279, %v563, 0
        %575 = vmatprep.subr.mxu0 0.0
        %576 = vmatpush1.msra.mxu0 %v565
        %577 = vmatprep.subr.mxu0 0.0
        %578 = vmatpush1.msra.mxu0 %v566
        %579 = vmatprep.subr.mxu0 0.0
        %580 = vmatpush1.msra.mxu0 %v567
        %581 = vmatprep.subr.mxu0 0.0
        %582 = vmatpush1.msra.mxu0 %v568
        %583 = vmatprep.subr.mxu0 0.0
        %584 = vmatpush1.msra.mxu0 0.0
        %585 = vmatprep.subr.mxu0 0.0
        %586 = vmatpush1.msra.mxu0 0.0
        %587 = vmatprep.subr.mxu0 0.0
        %588 = vmatpush1.msra.mxu0 0.0
        %589 = vmatprep.subr.mxu0 0.0
        %590 = vmatpush1.msra.mxu0 0.0
        %591 = vmatprep.subr.mxu0 0.0
        %592 = vmatpush1.msra.mxu0 0.0
        %593 = vmatprep.subr.mxu0 0.0
        %594 = vmatpush1.msra.mxu0 0.0
        %595 = vmatprep.subr.mxu0 0.0
        %596 = vmatpush1.msra.mxu0 0.0
        %597 = vmatprep.subr.mxu0 0.0
        %598 = vmatpush1.msra.mxu0 0.0
        %599 = vmatprep.subr.mxu0 0.0
        %600 = vmatpush1.msra.mxu0 0.0
        %601 = vmatprep.subr.mxu0 0.0
        %602 = vmatpush1.msra.mxu0 0.0
        %603 = vmatprep.subr.mxu0 0.0
        %604 = vmatpush1.msra.mxu0 0.0
        %605 = vmatprep.subr.mxu0 0.0
        %606 = vmatpush1.msra.mxu0 0.0
        %607 = vmatprep.subr.mxu0 0.0
        %608 = vmatpush1.msra.mxu0 0.0
        %609 = vmatprep.subr.mxu0 0.0
        %610 = vmatpush1.msra.mxu0 0.0
        %611 = vmatprep.subr.mxu0 0.0
        %612 = vmatpush1.msra.mxu0 0.0
        %613 = vmatprep.subr.mxu0 0.0
        %614 = vmatpush1.msra.mxu0 0.0
        %615 = vmatprep.subr.mxu0 0.0
        %616 = vmatpush1.msra.mxu0 0.0
        %617 = vmatprep.subr.mxu0 0.0
        %618 = vmatpush1.msra.mxu0 0.0
        %619 = vmatprep.subr.mxu0 0.0
        %620 = vmatpush1.msra.mxu0 0.0
        %621 = vmatprep.subr.mxu0 0.0
        %622 = vmatpush1.msra.mxu0 0.0
        %623 = vmatprep.subr.mxu0 0.0
        %624 = vmatpush1.msra.mxu0 0.0
        %625 = vmatprep.subr.mxu0 0.0
        %626 = vmatpush1.msra.mxu0 0.0
        %627 = vmatprep.subr.mxu0 0.0
        %628 = vmatpush1.msra.mxu0 0.0
        %629 = vmatprep.subr.mxu0 0.0
        %630 = vmatpush1.msra.mxu0 0.0
        %631 = vmatprep.subr.mxu0 0.0
        %632 = vmatpush1.msra.mxu0 0.0
        %633 = vmatprep.subr.mxu0 0.0
        %634 = vmatpush1.msra.mxu0 0.0
        %635 = vmatprep.subr.mxu0 0.0
        %636 = vmatpush1.msra.mxu0 0.0
        %637 = vmatprep.subr.mxu0 0.0
        %638 = vmatpush1.msra.mxu0 0.0
        %639 = vmatprep.mubr.f32.mxu0 0.0
        %640 = vmatmul.mubr.f32.gmra.mrb[0].mxu0 %v570
        %v641 = vpop.f32.mrb[0].mxu0
        %v642 = vadd.f32 0.0, %v641
        %v643 = vpop.f32.mrb[0].mxu0
        %644 = vmatprep.mubr.f32.mxu0 0.0
        %645 = vmatmul.mubr.f32.gmra.mrb[0].mxu0 %v573
        %v646 = vpop.f32.mrb[0].mxu0
        %v647 = vadd.f32 0.0, %v646
        %v648 = vpop.f32.mrb[0].mxu0
        %649 = vdwg.mxu0
        %v650 = vadd.f32 %v559, %v642
        %v651 = vadd.f32 %v560, %v647
        %652 = vst.msk [vmem:[%s558] sm:$0xff] %vm363, %v650
        %653 = vst.msk [vmem:[%s558 + $0x8] sm:$0xff] %vm363, %v651
        // Predicated region
        $region33: #{tpu_custom_call.1} parent=27 // pred_check
          %p654 = pneg %p258
        $region34: #{tpu_custom_call.1} parent=27 // pred_check_branch
          %656 = sbr.rel (%p654) target = $region36
        $region35: #{tpu_custom_call.1} parent=27 // pred_region
          %v657 = vld [vmem:[#allocation2] sm:$0xff]
          %v658 = vld [vmem:[#allocation2 + $0x8] sm:$0xff]
          %659 = vxpose.xlu0.b32.start [1/16] %v657, 128
          %660 = vxpose.xlu0.b32.cont [2/16] %v658, 128
          %661 = vxpose.xlu0.b32.cont [3/16] 0.0, 128
          %662 = vxpose.xlu0.b32.cont [4/16] 0.0, 128
          %663 = vxpose.xlu0.b32.cont [5/16] 0.0, 128
          %664 = vxpose.xlu0.b32.cont [6/16] 0.0, 128
          %665 = vxpose.xlu0.b32.cont [7/16] 0.0, 128
          %666 = vxpose.xlu0.b32.cont [8/16] 0.0, 128
          %667 = vxpose.xlu0.b32.cont [9/16] 0.0, 128
          %668 = vxpose.xlu0.b32.cont [10/16] 0.0, 128
          %669 = vxpose.xlu0.b32.cont [11/16] 0.0, 128
          %670 = vxpose.xlu0.b32.cont [12/16] 0.0, 128
          %671 = vxpose.xlu0.b32.cont [13/16] 0.0, 128
          %672 = vxpose.xlu0.b32.cont [14/16] 0.0, 128
          %673 = vxpose.xlu0.b32.cont [15/16] 0.0, 128
          %674 = vxpose.xlu0.b32.end [16/16] 0.0, 128
          %v675 = vpop.trf.xlu0
          %v676 = vpop.trf.xlu0
          %v677 = vpop.trf.xlu0
          %v678 = vpop.trf.xlu0
          %v679 = vpop.trf.xlu0
          %v680 = vpop.trf.xlu0
          %v681 = vpop.trf.xlu0
          %v682 = vpop.trf.xlu0
          %v683 = vpop.trf.xlu0
          %v684 = vpop.trf.xlu0
          %v685 = vpop.trf.xlu0
          %v686 = vpop.trf.xlu0
          %v687 = vpop.trf.xlu0
          %v688 = vpop.trf.xlu0
          %v689 = vpop.trf.xlu0
          %v690 = vpop.trf.xlu0
          %691 = vst.msk [vmem:[%s225] sm:$0xff] %vm363, %v675
          %692 = vst.msk [vmem:[%s225 + $0x8] sm:$0xff] %vm363, %v676
          %v693 = vld [vmem:[%s366] sm:$0xff]
          %v694 = vld [vmem:[%s366 + $0x8] sm:$0xff]
          %695 = vxpose.xlu0.b32.start [1/16] %v693, 128
          %696 = vxpose.xlu0.b32.cont [2/16] %v694, 128
          %697 = vxpose.xlu0.b32.cont [3/16] 0.0, 128
          %698 = vxpose.xlu0.b32.cont [4/16] 0.0, 128
          %699 = vxpose.xlu0.b32.cont [5/16] 0.0, 128
          %700 = vxpose.xlu0.b32.cont [6/16] 0.0, 128
          %701 = vxpose.xlu0.b32.cont [7/16] 0.0, 128
          %702 = vxpose.xlu0.b32.cont [8/16] 0.0, 128
          %703 = vxpose.xlu0.b32.cont [9/16] 0.0, 128
          %704 = vxpose.xlu0.b32.cont [10/16] 0.0, 128
          %705 = vxpose.xlu0.b32.cont [11/16] 0.0, 128
          %706 = vxpose.xlu0.b32.cont [12/16] 0.0, 128
          %707 = vxpose.xlu0.b32.cont [13/16] 0.0, 128
          %708 = vxpose.xlu0.b32.cont [14/16] 0.0, 128
          %709 = vxpose.xlu0.b32.cont [15/16] 0.0, 128
          %710 = vxpose.xlu0.b32.end [16/16] 0.0, 128
          %v711 = vpop.trf.xlu0
          %v712 = vpop.trf.xlu0
          %v713 = vpop.trf.xlu0
          %v714 = vpop.trf.xlu0
          %v715 = vpop.trf.xlu0
          %v716 = vpop.trf.xlu0
          %v717 = vpop.trf.xlu0
          %v718 = vpop.trf.xlu0
          %v719 = vpop.trf.xlu0
          %v720 = vpop.trf.xlu0
          %v721 = vpop.trf.xlu0
          %v722 = vpop.trf.xlu0
          %v723 = vpop.trf.xlu0
          %v724 = vpop.trf.xlu0
          %v725 = vpop.trf.xlu0
          %v726 = vpop.trf.xlu0
          %s727 = scalar_lea.vmem %s225, 16 [#allocation3]
          %728 = vst.msk [vmem:[%s727] sm:$0xff] %vm363, %v711
          %729 = vst.msk [vmem:[%s727 + $0x8] sm:$0xff] %vm363, %v712
          %v730 = vld [vmem:[%s462] sm:$0xff]
          %v731 = vld [vmem:[%s462 + $0x8] sm:$0xff]
          %732 = vxpose.xlu0.b32.start [1/16] %v730, 128
          %733 = vxpose.xlu0.b32.cont [2/16] %v731, 128
          %734 = vxpose.xlu0.b32.cont [3/16] 0.0, 128
          %735 = vxpose.xlu0.b32.cont [4/16] 0.0, 128
          %736 = vxpose.xlu0.b32.cont [5/16] 0.0, 128
          %737 = vxpose.xlu0.b32.cont [6/16] 0.0, 128
          %738 = vxpose.xlu0.b32.cont [7/16] 0.0, 128
          %739 = vxpose.xlu0.b32.cont [8/16] 0.0, 128
          %740 = vxpose.xlu0.b32.cont [9/16] 0.0, 128
          %741 = vxpose.xlu0.b32.cont [10/16] 0.0, 128
          %742 = vxpose.xlu0.b32.cont [11/16] 0.0, 128
          %743 = vxpose.xlu0.b32.cont [12/16] 0.0, 128
          %744 = vxpose.xlu0.b32.cont [13/16] 0.0, 128
          %745 = vxpose.xlu0.b32.cont [14/16] 0.0, 128
          %746 = vxpose.xlu0.b32.cont [15/16] 0.0, 128
          %747 = vxpose.xlu0.b32.end [16/16] 0.0, 128
          %v748 = vpop.trf.xlu0
          %v749 = vpop.trf.xlu0
          %v750 = vpop.trf.xlu0
          %v751 = vpop.trf.xlu0
          %v752 = vpop.trf.xlu0
          %v753 = vpop.trf.xlu0
          %v754 = vpop.trf.xlu0
          %v755 = vpop.trf.xlu0
          %v756 = vpop.trf.xlu0
          %v757 = vpop.trf.xlu0
          %v758 = vpop.trf.xlu0
          %v759 = vpop.trf.xlu0
          %v760 = vpop.trf.xlu0
          %v761 = vpop.trf.xlu0
          %v762 = vpop.trf.xlu0
          %v763 = vpop.trf.xlu0
          %s764 = scalar_lea.vmem %s225, 32 [#allocation3]
          %765 = vst.msk [vmem:[%s764] sm:$0xff] %vm363, %v748
          %766 = vst.msk [vmem:[%s764 + $0x8] sm:$0xff] %vm363, %v749
          %v767 = vld [vmem:[%s558] sm:$0xff]
          %v768 = vld [vmem:[%s558 + $0x8] sm:$0xff]
          %769 = vxpose.xlu0.b32.start [1/16] %v767, 128
          %770 = vxpose.xlu0.b32.cont [2/16] %v768, 128
          %771 = vxpose.xlu0.b32.cont [3/16] 0.0, 128
          %772 = vxpose.xlu0.b32.cont [4/16] 0.0, 128
          %773 = vxpose.xlu0.b32.cont [5/16] 0.0, 128
          %774 = vxpose.xlu0.b32.cont [6/16] 0.0, 128
          %775 = vxpose.xlu0.b32.cont [7/16] 0.0, 128
          %776 = vxpose.xlu0.b32.cont [8/16] 0.0, 128
          %777 = vxpose.xlu0.b32.cont [9/16] 0.0, 128
          %778 = vxpose.xlu0.b32.cont [10/16] 0.0, 128
          %779 = vxpose.xlu0.b32.cont [11/16] 0.0, 128
          %780 = vxpose.xlu0.b32.cont [12/16] 0.0, 128
          %781 = vxpose.xlu0.b32.cont [13/16] 0.0, 128
          %782 = vxpose.xlu0.b32.cont [14/16] 0.0, 128
          %783 = vxpose.xlu0.b32.cont [15/16] 0.0, 128
          %784 = vxpose.xlu0.b32.end [16/16] 0.0, 128
          %v785 = vpop.trf.xlu0
          %v786 = vpop.trf.xlu0
          %v787 = vpop.trf.xlu0
          %v788 = vpop.trf.xlu0
          %v789 = vpop.trf.xlu0
          %v790 = vpop.trf.xlu0
          %v791 = vpop.trf.xlu0
          %v792 = vpop.trf.xlu0
          %v793 = vpop.trf.xlu0
          %v794 = vpop.trf.xlu0
          %v795 = vpop.trf.xlu0
          %v796 = vpop.trf.xlu0
          %v797 = vpop.trf.xlu0
          %v798 = vpop.trf.xlu0
          %v799 = vpop.trf.xlu0
          %v800 = vpop.trf.xlu0
          %s801 = scalar_lea.vmem %s225, 48 [#allocation3]
          %802 = vst.msk [vmem:[%s801] sm:$0xff] %vm363, %v785
          %803 = vst.msk [vmem:[%s801 + $0x8] sm:$0xff] %vm363, %v786
        $region36: #{tpu_custom_call.1} parent=27 // pred_fallthru
          _
        %s804 = sand.u32 %s114, 1
        %s805 = scalar_lea.sflag [#allocation4], %s804
        %s806 = sand.u32 %s114, 1
        %s807 = smul.addr %s806, 64
        %s808 = scalar_lea.vmem [#allocation3], %s807
        // Predicated region
        $region37: #{tpu_custom_call.1} parent=27 // pred_check
          %p809 = pneg %p124
        $region38: #{tpu_custom_call.1} parent=27 // pred_check_branch
          %811 = sbr.rel (%p809) target = $region40
        $region39: #{tpu_custom_call.1} parent=27 // pred_region
          %s812 = smul.u32 4, %s22
          %s813 = smul.u32 2, %s23
          %s815 = ssub.s32 1024, 1024
          %816 = vsyncadd %s805, %s815
          %s817 = sadd.s32 %s24, %s813
          %s818 = smul.addr %s812, 2
          %s819 = sadd.s32 %s817, %s818
          %s820 = smul.addr %s819, 128
          %s821 = scalar_lea.hbm %s2, %s820
          %s822 = sshll.u32 %s808, 4
          %s823 = int_to_ptr.vmem [resolvable:$true] %s822
          %828 = dma.vmem_to_hbm [thread:$0]  %s823, 1024, %s821, %s805, 128, 128, 8
        $region40: #{tpu_custom_call.1} parent=27 // pred_fallthru
          _
      $region28: #{tpu_custom_call.1} parent=5 // pred_fallthru
        _
      %p829 = scmp.le.s32.totalorder 2, %s11
      // Predicated region
      $region41: #{tpu_custom_call.1} parent=5 // pred_check
        %p830 = pneg %p829
      $region42: #{tpu_custom_call.1} parent=5 // pred_check_branch
        %832 = sbr.rel (%p830) target = $region44
      $region43: #{tpu_custom_call.1} parent=5 // pred_region
        %s833 = ssub.s32 %s11, 2
        // Predicated region
        $region45: #{tpu_custom_call.1} parent=43 // pred_check
          %p834 = pneg %p130
        $region46: #{tpu_custom_call.1} parent=43 // pred_check_branch
          %836 = sbr.rel (%p834) target = $region48
        $region47: #{tpu_custom_call.1} parent=43 // pred_region
          %s837 = sand.u32 %s115, 1
          %s838 = scalar_lea.sflag [#allocation4], %s837
          %s839 = sand.u32 %s115, 1
          %s840 = smul.addr %s839, 64
          %s841 = scalar_lea.vmem [#allocation3], %s840
          %842 = dma.done %s838, 1024
        $region48: #{tpu_custom_call.1} parent=43 // pred_fallthru
          _
      $region44: #{tpu_custom_call.1} parent=5 // pred_fallthru
        _
    $region6: #{tpu_custom_call.1} parent=1 // loop_footer
      %s15 = sadd.s32 1, %s11
    $region7: #{tpu_custom_call.1} parent=1 // loop_footer_branch
      %10 = sbr.rel target = $region3
    $region8: #{tpu_custom_call.1} parent=1 // loop_exit
      _
    %843 = vsyncpa [#allocation4], 1
    %s844 = scalar_lea.sflag [#allocation4], 1
    %845 = vsyncpa %s844, 1

</llo_original>
